<compile_context>
chip_gen: v7x
topology: tpu7x:2x2x1
jax: 0.10.0
libtpu: 0.0.40
codegen_flags: <defaults>
</compile_context>

<pallas_src>
import functools

import jax
import jax.numpy as jnp
from jax import lax
from jax.experimental import pallas as pl
from jax.experimental.pallas import tpu as pltpu

BETA = 0.65
THRESHOLD = 1.0


def _round_up(x, m):
    return (x + m - 1) // m * m


def _vmem_estimate(tt, tm, tn, inp):
    """Rough VMEM working set (bytes) for one (batch, out) tile of the kernel."""
    bf16, f32 = 2, 4
    x_blk = 2 * tt * tm * inp * bf16        # x time chunk, double-buffered
    w_blk = 2 * inp * tn * bf16             # weight tile (double-buffered by Pallas)
    b_blk = 2 * tn * f32                    # bias tile
    mem_blk = 2 * tm * tn * f32             # initial membrane tile
    spk_blk = 2 * tt * tm * tn * bf16       # spike output chunk
    memf_blk = 2 * tm * tn * f32            # final membrane output
    scratch = tm * tn * f32                 # membrane accumulator
    cur = tt * tm * tn * f32                # matmul result intermediate
    return x_blk + w_blk + b_blk + mem_blk + spk_blk + memf_blk + scratch + cur


def _lif_seq_kernel(x_ref, w_ref, b_ref, mem0_ref,      # inputs
                    spk_ref, memf_ref,                  # outputs
                    mem_acc,                            # VMEM scratch (state)
                    *, beta, threshold, tt, tm, n_steps, time_padded):
    c = pl.program_id(2)                                # time-chunk index

    # Initialize the resident membrane state for this (batch, out) tile.
    @pl.when(c == 0)
    def _():
        mem_acc[...] = mem0_ref[...]

    inp = x_ref.shape[-1]
    # One MXU call for the whole time chunk: the matmuls are independent of the
    # membrane state, so Tt timesteps are folded into the M dimension.
    # bf16 x bf16 operands, f32 accumulation; W is in native (K, N) layout.
    x = x_ref[...].reshape(tt * tm, inp)
    cur_all = jnp.dot(x, w_ref[...], preferred_element_type=jnp.float32)
    cur_all = cur_all + b_ref[...]                      # (Tt*tm, tn) + (1, tn)

    # Sequential (but cheap, VPU-only) LIF recurrence over the Tt rows — fully
    # unrolled at trace time (tt is a static Python int).
    mem = mem_acc[...]
    for r in range(tt):
        cur = cur_all[r * tm:(r + 1) * tm, :]
        reset = (mem > threshold).astype(jnp.float32)
        mem_new = beta * mem + cur - reset * threshold
        spk_ref[r] = (mem_new > threshold).astype(spk_ref.dtype)
        if time_padded:
            # Freeze the state on zero-padded trailing timesteps so the final
            # membrane corresponds exactly to the T real steps.
            mem = jnp.where(c * tt + r < n_steps, mem_new, mem)
        else:
            mem = mem_new
    mem_acc[...] = mem

    # Write the final membrane back to HBM only once, on the last time chunk.
    @pl.when(c == pl.num_programs(2) - 1)
    def _():
        memf_ref[...] = mem.astype(memf_ref.dtype)


@functools.partial(jax.jit, static_argnames=("beta", "threshold"))
def layer_forward_sequence(x_seq, w, b, mem, *, beta=BETA, threshold=THRESHOLD):
    """Run the Layer recurrence over a whole sequence in one pallas_call.

    x_seq: [T, B, IN], w: [OUT, IN] (PyTorch layout), b: [OUT], mem: [B, OUT]
    Returns (spk_seq [T, B, OUT] in bf16 (values exactly 0/1), mem_final [B, OUT] f32).
    """
    T, B, IN = x_seq.shape
    OUT, IN_w = w.shape
    assert IN == IN_w and mem.shape == (B, OUT)

    f32, bf16 = jnp.float32, jnp.bfloat16

    INp = _round_up(IN, 128)
    # Batch tile aligned to 16 sublanes (bf16 packing) for clean reshapes/stores.
    tm = min(_round_up(B, 16), 256)
    # Fold enough timesteps to give the MXU a ~256-row LHS (but never more than T).
    tt = max(1, min(max(1, 256 // tm), T))
    tn = min(_round_up(OUT, 128), 512)

    # Shrink tiles under a ~40 MiB VMEM working-set budget (v7x has 64 MiB
    # physical / 32 MiB default scoped; v5e default scoped is only 16 MiB).
    budget = 40 * 1024 * 1024
    while _vmem_estimate(tt, tm, tn, INp) > budget:
        if tn > 128:
            tn = max(128, _round_up(tn // 2, 128))
        elif tt > 1:
            tt = max(1, tt // 2)
        elif tm > 16:
            tm = max(16, _round_up(tm // 2, 16))
        else:
            break

    Bp = _round_up(B, tm)
    OUTp = _round_up(_round_up(OUT, 128), tn)
    nb, no = Bp // tm, OUTp // tn

    # v7x has 2 TensorCores sharded over "parallel" grid axes; if the problem
    # collapsed to a single (i, j) tile, split the output axis so the second
    # core is not idle (costs one extra streaming pass over x — small tiles only).
    if nb == 1 and no == 1 and OUTp % 256 == 0:
        tn = OUTp // 2
        no = 2

    Tp = _round_up(T, tt)
    nt = Tp // tt
    time_padded = Tp != T

    # Pad/cast only when needed (avoids an extra full HBM round trip of x_seq
    # when shapes are already aligned). MXU operands in bf16; state math in f32.
    def pad_cast(a, shape, dtype):
        a = a.astype(dtype)
        if a.shape == tuple(shape):
            return a
        pads = [(0, s - d) for s, d in zip(shape, a.shape)]
        return jnp.pad(a, pads)   # zero padding keeps real outputs exact

    x_p = pad_cast(x_seq, (Tp, Bp, INp), bf16)
    w_p = pad_cast(w.T, (INp, OUTp), bf16)              # native (K, N) MXU layout
    b_p = pad_cast(b.reshape(1, OUT), (1, OUTp), f32)
    mem_p = pad_cast(mem, (Bp, OUTp), f32)

    kernel = functools.partial(
        _lif_seq_kernel, beta=beta, threshold=threshold,
        tt=tt, tm=tm, n_steps=T, time_padded=time_padded)

    est = _vmem_estimate(tt, tm, tn, INp)
    vmem_limit = int(min(max(2 * est, 32 * 1024 * 1024), 60 * 1024 * 1024))

    spk_p, memf_p = pl.pallas_call(
        kernel,
        out_shape=(
            jax.ShapeDtypeStruct((Tp, Bp, OUTp), bf16),   # spikes: exactly 0/1
            jax.ShapeDtypeStruct((Bp, OUTp), f32),
        ),
        grid_spec=pltpu.PrefetchScalarGridSpec(
            num_scalar_prefetch=0,
            grid=(nb, no, nt),
            in_specs=[
                # x chunk: Tt timesteps per grid step (pipelined DMA).
                pl.BlockSpec((tt, tm, INp), lambda i, j, c: (c, i, 0)),
                # W tile: block index independent of c -> stays resident in VMEM.
                pl.BlockSpec((INp, tn), lambda i, j, c: (0, j)),
                # bias tile: resident as well.
                pl.BlockSpec((1, tn), lambda i, j, c: (0, j)),
                # initial membrane tile: read once per (i, j).
                pl.BlockSpec((tm, tn), lambda i, j, c: (i, j)),
            ],
            out_specs=(
                # per-chunk spikes (lane-dense bf16 stores, tn multiple of 128).
                pl.BlockSpec((tt, tm, tn), lambda i, j, c: (c, i, j)),
                # final membrane: constant block index over c -> written once.
                pl.BlockSpec((tm, tn), lambda i, j, c: (i, j)),
            ),
            scratch_shapes=[pltpu.VMEM((tm, tn), jnp.float32)],
        ),
        compiler_params=pltpu.CompilerParams(
            dimension_semantics=("parallel", "parallel", "arbitrary"),
            vmem_limit_bytes=vmem_limit),
        # mem_final writes back into the (padded) mem input buffer.
        input_output_aliases={3: 1},
    )(x_p, w_p, b_p, mem_p)

    return spk_p[:T, :B, :OUT], memf_p[:B, :OUT]


def layer_forward(x, mem, w, b, *, beta=BETA, threshold=THRESHOLD):
    """Single-step interface matching Layer.forward(x, mem) -> (spk, mem)."""
    spk_seq, mem_new = layer_forward_sequence(
        x[None], w, b, mem, beta=beta, threshold=threshold)
    return spk_seq[0], mem_new


def _reference_step(x, mem, w, b, beta=BETA, threshold=THRESHOLD):
    # Match the kernel's precision: bf16 matmul operands, f32 accumulation.
    cur = jnp.dot(x.astype(jnp.bfloat16), w.T.astype(jnp.bfloat16),
                  preferred_element_type=jnp.float32) + b
    reset = (mem > threshold).astype(jnp.float32)
    mem_new = beta * mem + cur - reset * threshold
    spk = (mem_new > threshold).astype(jnp.float32)
    return spk, mem_new


if __name__ == "__main__":
    # Small shapes consistent with the module: Linear(16 -> 32), batch=2, T=8 steps.
    B, IN, OUT, T = 2, 16, 32, 8

    key = jax.random.PRNGKey(0)
    kx, km, kw, kb = jax.random.split(key, 4)

    # Deterministic params mimicking nn.Linear init: U(-1/sqrt(in), 1/sqrt(in)).
    bound = 1.0 / jnp.sqrt(jnp.float32(IN))
    w = jax.random.uniform(kw, (OUT, IN), jnp.float32, -bound, bound)
    b = jax.random.uniform(kb, (OUT,), jnp.float32, -bound, bound)

    x_seq = jax.random.normal(kx, (T, B, IN), jnp.float32)
    mem0 = jax.random.normal(km, (B, OUT), jnp.float32)

    # Fused multi-step kernel.
    spk_seq, mem_final = layer_forward_sequence(x_seq, w, b, mem0)
    jax.block_until_ready((spk_seq, mem_final))

    # Pure-JAX reference (step-by-step).
    mem_r = mem0
    spk_refs = []
    for t in range(T):
        s, mem_r = _reference_step(x_seq[t], mem_r, w, b)
        spk_refs.append(s)
    spk_ref = jnp.stack(spk_refs)

    assert spk_seq.shape == (T, B, OUT) and mem_final.shape == (B, OUT)
    assert jnp.allclose(spk_seq.astype(jnp.float32), spk_ref, atol=1e-5), \
        "spike mismatch (sequence)"
    assert jnp.allclose(mem_final, mem_r, atol=1e-4), "membrane mismatch (sequence)"

    # Single-step interface (exact Layer.forward semantics).
    spk1, mem1 = layer_forward(x_seq[0], mem0, w, b)
    jax.block_until_ready((spk1, mem1))
    s_ref, m_ref = _reference_step(x_seq[0], mem0, w, b)
    assert jnp.allclose(spk1.astype(jnp.float32), s_ref, atol=1e-5), \
        "spike mismatch (single step)"
    assert jnp.allclose(mem1, m_ref, atol=1e-4), "membrane mismatch (single step)"

    print("KERNEL_OK")
</pallas_src>

<mosaic_0001>
module attributes {stable_mosaic.version = 11 : i64} {
  func.func @_lif_seq_kernel(%arg0: i32, %arg1: i32, %arg2: i32, %arg3: memref<8x16x128xbf16, #tpu.memory_space<vmem>>, %arg4: memref<128x128xbf16, #tpu.memory_space<vmem>>, %arg5: memref<1x128xf32, #tpu.memory_space<vmem>>, %arg6: memref<16x128xf32, #tpu.memory_space<vmem>>, %arg7: memref<8x16x128xbf16, #tpu.memory_space<vmem>>, %arg8: memref<16x128xf32, #tpu.memory_space<vmem>>, %arg9: memref<16x128xf32, #tpu.memory_space<vmem>>) attributes {dimension_semantics = [#tpu.dimension_semantics<parallel>, #tpu.dimension_semantics<parallel>, #tpu.dimension_semantics<arbitrary>], iteration_bounds = array<i64: 1, 1, 1>, scalar_prefetch = 0 : i64, scratch_operands = 1 : i64, tpu.core_type = #tpu.core_type<tc>, window_params = [{transform_indices = @transform_0, window_bounds = array<i64: 8, 16, 128>}, {transform_indices = @transform_1, window_bounds = array<i64: 128, 128>}, {transform_indices = @transform_2, window_bounds = array<i64: 1, 128>}, {transform_indices = @transform_3, window_bounds = array<i64: 16, 128>}, {transform_indices = @transform_4, window_bounds = array<i64: 8, 16, 128>}, {transform_indices = @transform_5, window_bounds = array<i64: 16, 128>}]} {
    %c0_i32 = arith.constant 0 : i32
    %0 = arith.cmpi eq, %arg2, %c0_i32 : i32
    %1 = arith.extui %0 : i1 to i32
    %c0_i32_0 = arith.constant 0 : i32
    %2 = arith.cmpi ne, %1, %c0_i32_0 : i32
    scf.if %2 {
      %c0_62 = arith.constant 0 : index
      %c0_63 = arith.constant 0 : index
      %167 = vector.load %arg6[%c0_62, %c0_63] : memref<16x128xf32, #tpu.memory_space<vmem>>, vector<16x128xf32>
      %c0_64 = arith.constant 0 : index
      %c0_65 = arith.constant 0 : index
      %168 = vector.load %arg9[%c0_64, %c0_65] : memref<16x128xf32, #tpu.memory_space<vmem>>, vector<16x128xf32>
      tpu.vector_store %arg9[%c0_64, %c0_65], %167 {strides = array<i32>} : memref<16x128xf32, #tpu.memory_space<vmem>>, vector<16x128xf32>,
    } else {
    }
    %c0 = arith.constant 0 : index
    %c0_1 = arith.constant 0 : index
    %c0_2 = arith.constant 0 : index
    %3 = vector.load %arg3[%c0, %c0_1, %c0_2] : memref<8x16x128xbf16, #tpu.memory_space<vmem>>, vector<8x16x128xbf16>
    %4 = vector.shape_cast %3 : vector<8x16x128xbf16> to vector<128x128xbf16>
    %c0_3 = arith.constant 0 : index
    %c0_4 = arith.constant 0 : index
    %5 = vector.load %arg4[%c0_3, %c0_4] : memref<128x128xbf16, #tpu.memory_space<vmem>>, vector<128x128xbf16>
    %cst = arith.constant dense<0.000000e+00> : vector<128x128xf32>
    %6 = tpu.matmul %4, %5, %cst {dimension_numbers = #tpu.dot_dimension_numbers<[1], [0], [0], [1], [0, 0, 1, 1], [], []>} : vector<128x128xbf16>, vector<128x128xbf16>, vector<128x128xf32> -> vector<128x128xf32>
    %c0_5 = arith.constant 0 : index
    %c0_6 = arith.constant 0 : index
    %7 = vector.load %arg5[%c0_5, %c0_6] : memref<1x128xf32, #tpu.memory_space<vmem>>, vector<1x128xf32>
    %8 = vector.broadcast %7 : vector<1x128xf32> to vector<128x128xf32>
    %9 = arith.addf %6, %8 : vector<128x128xf32>
    %c0_7 = arith.constant 0 : index
    %c0_8 = arith.constant 0 : index
    %10 = vector.load %arg9[%c0_7, %c0_8] : memref<16x128xf32, #tpu.memory_space<vmem>>, vector<16x128xf32>
    %11 = vector.extract_strided_slice %9 {offsets = [0, 0], sizes = [16, 128], strides = [1, 1]} : vector<128x128xf32> to vector<16x128xf32>
    %cst_9 = arith.constant 1.000000e+00 : f32
    %12 = vector.broadcast %cst_9 : f32 to vector<16x128xf32>
    %13 = arith.cmpf ogt, %10, %12 : vector<16x128xf32>
    %14 = arith.extui %13 : vector<16x128xi1> to vector<16x128xi32>
    %15 = arith.sitofp %14 : vector<16x128xi32> to vector<16x128xf32>
    %cst_10 = arith.constant 6.500000e-01 : f32
    %16 = vector.broadcast %cst_10 : f32 to vector<16x128xf32>
    %17 = arith.mulf %16, %10 : vector<16x128xf32>
    %18 = arith.addf %17, %11 : vector<16x128xf32>
    %cst_11 = arith.constant 1.000000e+00 : f32
    %19 = vector.broadcast %cst_11 : f32 to vector<16x128xf32>
    %20 = arith.mulf %15, %19 : vector<16x128xf32>
    %21 = arith.subf %18, %20 : vector<16x128xf32>
    %cst_12 = arith.constant 1.000000e+00 : f32
    %22 = vector.broadcast %cst_12 : f32 to vector<16x128xf32>
    %23 = arith.cmpf ogt, %21, %22 : vector<16x128xf32>
    %24 = arith.extui %23 : vector<16x128xi1> to vector<16x128xi32>
    %25 = arith.sitofp %24 : vector<16x128xi32> to vector<16x128xf32>
    %26 = arith.truncf %25 : vector<16x128xf32> to vector<16x128xbf16>
    %c0_13 = arith.constant 0 : index
    %c0_14 = arith.constant 0 : index
    %c0_15 = arith.constant 0 : index
    %27 = vector.load %arg7[%c0_13, %c0_14, %c0_15] : memref<8x16x128xbf16, #tpu.memory_space<vmem>>, vector<1x16x128xbf16>
    %28 = vector.shape_cast %27 : vector<1x16x128xbf16> to vector<16x128xbf16>
    %29 = vector.shape_cast %26 : vector<16x128xbf16> to vector<1x16x128xbf16>
    tpu.vector_store %arg7[%c0_13, %c0_14, %c0_15], %29 {strides = array<i32>} : memref<8x16x128xbf16, #tpu.memory_space<vmem>>, vector<1x16x128xbf16>,
    %30 = vector.extract_strided_slice %9 {offsets = [16, 0], sizes = [16, 128], strides = [1, 1]} : vector<128x128xf32> to vector<16x128xf32>
    %cst_16 = arith.constant 1.000000e+00 : f32
    %31 = vector.broadcast %cst_16 : f32 to vector<16x128xf32>
    %32 = arith.cmpf ogt, %21, %31 : vector<16x128xf32>
    %33 = arith.extui %32 : vector<16x128xi1> to vector<16x128xi32>
    %34 = arith.sitofp %33 : vector<16x128xi32> to vector<16x128xf32>
    %cst_17 = arith.constant 6.500000e-01 : f32
    %35 = vector.broadcast %cst_17 : f32 to vector<16x128xf32>
    %36 = arith.mulf %35, %21 : vector<16x128xf32>
    %37 = arith.addf %36, %30 : vector<16x128xf32>
    %cst_18 = arith.constant 1.000000e+00 : f32
    %38 = vector.broadcast %cst_18 : f32 to vector<16x128xf32>
    %39 = arith.mulf %34, %38 : vector<16x128xf32>
    %40 = arith.subf %37, %39 : vector<16x128xf32>
    %cst_19 = arith.constant 1.000000e+00 : f32
    %41 = vector.broadcast %cst_19 : f32 to vector<16x128xf32>
    %42 = arith.cmpf ogt, %40, %41 : vector<16x128xf32>
    %43 = arith.extui %42 : vector<16x128xi1> to vector<16x128xi32>
    %44 = arith.sitofp %43 : vector<16x128xi32> to vector<16x128xf32>
    %45 = arith.truncf %44 : vector<16x128xf32> to vector<16x128xbf16>
    %c1 = arith.constant 1 : index
    %c0_20 = arith.constant 0 : index
    %c0_21 = arith.constant 0 : index
    %46 = vector.load %arg7[%c1, %c0_20, %c0_21] : memref<8x16x128xbf16, #tpu.memory_space<vmem>>, vector<1x16x128xbf16>
    %47 = vector.shape_cast %46 : vector<1x16x128xbf16> to vector<16x128xbf16>
    %48 = vector.shape_cast %45 : vector<16x128xbf16> to vector<1x16x128xbf16>
    tpu.vector_store %arg7[%c1, %c0_20, %c0_21], %48 {strides = array<i32>} : memref<8x16x128xbf16, #tpu.memory_space<vmem>>, vector<1x16x128xbf16>,
    %49 = vector.extract_strided_slice %9 {offsets = [32, 0], sizes = [16, 128], strides = [1, 1]} : vector<128x128xf32> to vector<16x128xf32>
    %cst_22 = arith.constant 1.000000e+00 : f32
    %50 = vector.broadcast %cst_22 : f32 to vector<16x128xf32>
    %51 = arith.cmpf ogt, %40, %50 : vector<16x128xf32>
    %52 = arith.extui %51 : vector<16x128xi1> to vector<16x128xi32>
    %53 = arith.sitofp %52 : vector<16x128xi32> to vector<16x128xf32>
    %cst_23 = arith.constant 6.500000e-01 : f32
    %54 = vector.broadcast %cst_23 : f32 to vector<16x128xf32>
    %55 = arith.mulf %54, %40 : vector<16x128xf32>
    %56 = arith.addf %55, %49 : vector<16x128xf32>
    %cst_24 = arith.constant 1.000000e+00 : f32
    %57 = vector.broadcast %cst_24 : f32 to vector<16x128xf32>
    %58 = arith.mulf %53, %57 : vector<16x128xf32>
    %59 = arith.subf %56, %58 : vector<16x128xf32>
    %cst_25 = arith.constant 1.000000e+00 : f32
    %60 = vector.broadcast %cst_25 : f32 to vector<16x128xf32>
    %61 = arith.cmpf ogt, %59, %60 : vector<16x128xf32>
    %62 = arith.extui %61 : vector<16x128xi1> to vector<16x128xi32>
    %63 = arith.sitofp %62 : vector<16x128xi32> to vector<16x128xf32>
    %64 = arith.truncf %63 : vector<16x128xf32> to vector<16x128xbf16>
    %c2 = arith.constant 2 : index
    %c0_26 = arith.constant 0 : index
    %c0_27 = arith.constant 0 : index
    %65 = vector.load %arg7[%c2, %c0_26, %c0_27] : memref<8x16x128xbf16, #tpu.memory_space<vmem>>, vector<1x16x128xbf16>
    %66 = vector.shape_cast %65 : vector<1x16x128xbf16> to vector<16x128xbf16>
    %67 = vector.shape_cast %64 : vector<16x128xbf16> to vector<1x16x128xbf16>
    tpu.vector_store %arg7[%c2, %c0_26, %c0_27], %67 {strides = array<i32>} : memref<8x16x128xbf16, #tpu.memory_space<vmem>>, vector<1x16x128xbf16>,
    %68 = vector.extract_strided_slice %9 {offsets = [48, 0], sizes = [16, 128], strides = [1, 1]} : vector<128x128xf32> to vector<16x128xf32>
    %cst_28 = arith.constant 1.000000e+00 : f32
    %69 = vector.broadcast %cst_28 : f32 to vector<16x128xf32>
    %70 = arith.cmpf ogt, %59, %69 : vector<16x128xf32>
    %71 = arith.extui %70 : vector<16x128xi1> to vector<16x128xi32>
    %72 = arith.sitofp %71 : vector<16x128xi32> to vector<16x128xf32>
    %cst_29 = arith.constant 6.500000e-01 : f32
    %73 = vector.broadcast %cst_29 : f32 to vector<16x128xf32>
    %74 = arith.mulf %73, %59 : vector<16x128xf32>
    %75 = arith.addf %74, %68 : vector<16x128xf32>
    %cst_30 = arith.constant 1.000000e+00 : f32
    %76 = vector.broadcast %cst_30 : f32 to vector<16x128xf32>
    %77 = arith.mulf %72, %76 : vector<16x128xf32>
    %78 = arith.subf %75, %77 : vector<16x128xf32>
    %cst_31 = arith.constant 1.000000e+00 : f32
    %79 = vector.broadcast %cst_31 : f32 to vector<16x128xf32>
    %80 = arith.cmpf ogt, %78, %79 : vector<16x128xf32>
    %81 = arith.extui %80 : vector<16x128xi1> to vector<16x128xi32>
    %82 = arith.sitofp %81 : vector<16x128xi32> to vector<16x128xf32>
    %83 = arith.truncf %82 : vector<16x128xf32> to vector<16x128xbf16>
    %c3 = arith.constant 3 : index
    %c0_32 = arith.constant 0 : index
    %c0_33 = arith.constant 0 : index
    %84 = vector.load %arg7[%c3, %c0_32, %c0_33] : memref<8x16x128xbf16, #tpu.memory_space<vmem>>, vector<1x16x128xbf16>
    %85 = vector.shape_cast %84 : vector<1x16x128xbf16> to vector<16x128xbf16>
    %86 = vector.shape_cast %83 : vector<16x128xbf16> to vector<1x16x128xbf16>
    tpu.vector_store %arg7[%c3, %c0_32, %c0_33], %86 {strides = array<i32>} : memref<8x16x128xbf16, #tpu.memory_space<vmem>>, vector<1x16x128xbf16>,
    %87 = vector.extract_strided_slice %9 {offsets = [64, 0], sizes = [16, 128], strides = [1, 1]} : vector<128x128xf32> to vector<16x128xf32>
    %cst_34 = arith.constant 1.000000e+00 : f32
    %88 = vector.broadcast %cst_34 : f32 to vector<16x128xf32>
    %89 = arith.cmpf ogt, %78, %88 : vector<16x128xf32>
    %90 = arith.extui %89 : vector<16x128xi1> to vector<16x128xi32>
    %91 = arith.sitofp %90 : vector<16x128xi32> to vector<16x128xf32>
    %cst_35 = arith.constant 6.500000e-01 : f32
    %92 = vector.broadcast %cst_35 : f32 to vector<16x128xf32>
    %93 = arith.mulf %92, %78 : vector<16x128xf32>
    %94 = arith.addf %93, %87 : vector<16x128xf32>
    %cst_36 = arith.constant 1.000000e+00 : f32
    %95 = vector.broadcast %cst_36 : f32 to vector<16x128xf32>
    %96 = arith.mulf %91, %95 : vector<16x128xf32>
    %97 = arith.subf %94, %96 : vector<16x128xf32>
    %cst_37 = arith.constant 1.000000e+00 : f32
    %98 = vector.broadcast %cst_37 : f32 to vector<16x128xf32>
    %99 = arith.cmpf ogt, %97, %98 : vector<16x128xf32>
    %100 = arith.extui %99 : vector<16x128xi1> to vector<16x128xi32>
    %101 = arith.sitofp %100 : vector<16x128xi32> to vector<16x128xf32>
    %102 = arith.truncf %101 : vector<16x128xf32> to vector<16x128xbf16>
    %c4 = arith.constant 4 : index
    %c0_38 = arith.constant 0 : index
    %c0_39 = arith.constant 0 : index
    %103 = vector.load %arg7[%c4, %c0_38, %c0_39] : memref<8x16x128xbf16, #tpu.memory_space<vmem>>, vector<1x16x128xbf16>
    %104 = vector.shape_cast %103 : vector<1x16x128xbf16> to vector<16x128xbf16>
    %105 = vector.shape_cast %102 : vector<16x128xbf16> to vector<1x16x128xbf16>
    tpu.vector_store %arg7[%c4, %c0_38, %c0_39], %105 {strides = array<i32>} : memref<8x16x128xbf16, #tpu.memory_space<vmem>>, vector<1x16x128xbf16>,
    %106 = vector.extract_strided_slice %9 {offsets = [80, 0], sizes = [16, 128], strides = [1, 1]} : vector<128x128xf32> to vector<16x128xf32>
    %cst_40 = arith.constant 1.000000e+00 : f32
    %107 = vector.broadcast %cst_40 : f32 to vector<16x128xf32>
    %108 = arith.cmpf ogt, %97, %107 : vector<16x128xf32>
    %109 = arith.extui %108 : vector<16x128xi1> to vector<16x128xi32>
    %110 = arith.sitofp %109 : vector<16x128xi32> to vector<16x128xf32>
    %cst_41 = arith.constant 6.500000e-01 : f32
    %111 = vector.broadcast %cst_41 : f32 to vector<16x128xf32>
    %112 = arith.mulf %111, %97 : vector<16x128xf32>
    %113 = arith.addf %112, %106 : vector<16x128xf32>
    %cst_42 = arith.constant 1.000000e+00 : f32
    %114 = vector.broadcast %cst_42 : f32 to vector<16x128xf32>
    %115 = arith.mulf %110, %114 : vector<16x128xf32>
    %116 = arith.subf %113, %115 : vector<16x128xf32>
    %cst_43 = arith.constant 1.000000e+00 : f32
    %117 = vector.broadcast %cst_43 : f32 to vector<16x128xf32>
    %118 = arith.cmpf ogt, %116, %117 : vector<16x128xf32>
    %119 = arith.extui %118 : vector<16x128xi1> to vector<16x128xi32>
    %120 = arith.sitofp %119 : vector<16x128xi32> to vector<16x128xf32>
    %121 = arith.truncf %120 : vector<16x128xf32> to vector<16x128xbf16>
    %c5 = arith.constant 5 : index
    %c0_44 = arith.constant 0 : index
    %c0_45 = arith.constant 0 : index
    %122 = vector.load %arg7[%c5, %c0_44, %c0_45] : memref<8x16x128xbf16, #tpu.memory_space<vmem>>, vector<1x16x128xbf16>
    %123 = vector.shape_cast %122 : vector<1x16x128xbf16> to vector<16x128xbf16>
    %124 = vector.shape_cast %121 : vector<16x128xbf16> to vector<1x16x128xbf16>
    tpu.vector_store %arg7[%c5, %c0_44, %c0_45], %124 {strides = array<i32>} : memref<8x16x128xbf16, #tpu.memory_space<vmem>>, vector<1x16x128xbf16>,
    %125 = vector.extract_strided_slice %9 {offsets = [96, 0], sizes = [16, 128], strides = [1, 1]} : vector<128x128xf32> to vector<16x128xf32>
    %cst_46 = arith.constant 1.000000e+00 : f32
    %126 = vector.broadcast %cst_46 : f32 to vector<16x128xf32>
    %127 = arith.cmpf ogt, %116, %126 : vector<16x128xf32>
    %128 = arith.extui %127 : vector<16x128xi1> to vector<16x128xi32>
    %129 = arith.sitofp %128 : vector<16x128xi32> to vector<16x128xf32>
    %cst_47 = arith.constant 6.500000e-01 : f32
    %130 = vector.broadcast %cst_47 : f32 to vector<16x128xf32>
    %131 = arith.mulf %130, %116 : vector<16x128xf32>
    %132 = arith.addf %131, %125 : vector<16x128xf32>
    %cst_48 = arith.constant 1.000000e+00 : f32
    %133 = vector.broadcast %cst_48 : f32 to vector<16x128xf32>
    %134 = arith.mulf %129, %133 : vector<16x128xf32>
    %135 = arith.subf %132, %134 : vector<16x128xf32>
    %cst_49 = arith.constant 1.000000e+00 : f32
    %136 = vector.broadcast %cst_49 : f32 to vector<16x128xf32>
    %137 = arith.cmpf ogt, %135, %136 : vector<16x128xf32>
    %138 = arith.extui %137 : vector<16x128xi1> to vector<16x128xi32>
    %139 = arith.sitofp %138 : vector<16x128xi32> to vector<16x128xf32>
    %140 = arith.truncf %139 : vector<16x128xf32> to vector<16x128xbf16>
    %c6 = arith.constant 6 : index
    %c0_50 = arith.constant 0 : index
    %c0_51 = arith.constant 0 : index
    %141 = vector.load %arg7[%c6, %c0_50, %c0_51] : memref<8x16x128xbf16, #tpu.memory_space<vmem>>, vector<1x16x128xbf16>
    %142 = vector.shape_cast %141 : vector<1x16x128xbf16> to vector<16x128xbf16>
    %143 = vector.shape_cast %140 : vector<16x128xbf16> to vector<1x16x128xbf16>
    tpu.vector_store %arg7[%c6, %c0_50, %c0_51], %143 {strides = array<i32>} : memref<8x16x128xbf16, #tpu.memory_space<vmem>>, vector<1x16x128xbf16>,
    %144 = vector.extract_strided_slice %9 {offsets = [112, 0], sizes = [16, 128], strides = [1, 1]} : vector<128x128xf32> to vector<16x128xf32>
    %cst_52 = arith.constant 1.000000e+00 : f32
    %145 = vector.broadcast %cst_52 : f32 to vector<16x128xf32>
    %146 = arith.cmpf ogt, %135, %145 : vector<16x128xf32>
    %147 = arith.extui %146 : vector<16x128xi1> to vector<16x128xi32>
    %148 = arith.sitofp %147 : vector<16x128xi32> to vector<16x128xf32>
    %cst_53 = arith.constant 6.500000e-01 : f32
    %149 = vector.broadcast %cst_53 : f32 to vector<16x128xf32>
    %150 = arith.mulf %149, %135 : vector<16x128xf32>
    %151 = arith.addf %150, %144 : vector<16x128xf32>
    %cst_54 = arith.constant 1.000000e+00 : f32
    %152 = vector.broadcast %cst_54 : f32 to vector<16x128xf32>
    %153 = arith.mulf %148, %152 : vector<16x128xf32>
    %154 = arith.subf %151, %153 : vector<16x128xf32>
    %cst_55 = arith.constant 1.000000e+00 : f32
    %155 = vector.broadcast %cst_55 : f32 to vector<16x128xf32>
    %156 = arith.cmpf ogt, %154, %155 : vector<16x128xf32>
    %157 = arith.extui %156 : vector<16x128xi1> to vector<16x128xi32>
    %158 = arith.sitofp %157 : vector<16x128xi32> to vector<16x128xf32>
    %159 = arith.truncf %158 : vector<16x128xf32> to vector<16x128xbf16>
    %c7 = arith.constant 7 : index
    %c0_56 = arith.constant 0 : index
    %c0_57 = arith.constant 0 : index
    %160 = vector.load %arg7[%c7, %c0_56, %c0_57] : memref<8x16x128xbf16, #tpu.memory_space<vmem>>, vector<1x16x128xbf16>
    %161 = vector.shape_cast %160 : vector<1x16x128xbf16> to vector<16x128xbf16>
    %162 = vector.shape_cast %159 : vector<16x128xbf16> to vector<1x16x128xbf16>
    tpu.vector_store %arg7[%c7, %c0_56, %c0_57], %162 {strides = array<i32>} : memref<8x16x128xbf16, #tpu.memory_space<vmem>>, vector<1x16x128xbf16>,
    %c0_58 = arith.constant 0 : index
    %c0_59 = arith.constant 0 : index
    %163 = vector.load %arg9[%c0_58, %c0_59] : memref<16x128xf32, #tpu.memory_space<vmem>>, vector<16x128xf32>
    tpu.vector_store %arg9[%c0_58, %c0_59], %154 {strides = array<i32>} : memref<16x128xf32, #tpu.memory_space<vmem>>, vector<16x128xf32>,
    %c0_i32_60 = arith.constant 0 : i32
    %164 = arith.cmpi eq, %arg2, %c0_i32_60 : i32
    %165 = arith.extui %164 : i1 to i32
    %c0_i32_61 = arith.constant 0 : i32
    %166 = arith.cmpi ne, %165, %c0_i32_61 : i32
    scf.if %166 {
      %c0_62 = arith.constant 0 : index
      %c0_63 = arith.constant 0 : index
      %167 = vector.load %arg8[%c0_62, %c0_63] : memref<16x128xf32, #tpu.memory_space<vmem>>, vector<16x128xf32>
      tpu.vector_store %arg8[%c0_62, %c0_63], %154 {strides = array<i32>} : memref<16x128xf32, #tpu.memory_space<vmem>>, vector<16x128xf32>,
    } else {
    }
    return
  }
  func.func @transform_0(%arg0: i32, %arg1: i32, %arg2: i32) -> (i32, i32, i32) {
    %c0_i32 = arith.constant 0 : i32
    %c0_i32_0 = arith.constant 0 : i32
    return %arg2, %arg0, %c0_i32 : i32, i32, i32
  }
  func.func @transform_1(%arg0: i32, %arg1: i32, %arg2: i32) -> (i32, i32) {
    %c0_i32 = arith.constant 0 : i32
    %c0_i32_0 = arith.constant 0 : i32
    return %c0_i32, %arg1 : i32, i32
  }
  func.func @transform_2(%arg0: i32, %arg1: i32, %arg2: i32) -> (i32, i32) {
    %c0_i32 = arith.constant 0 : i32
    %c0_i32_0 = arith.constant 0 : i32
    return %c0_i32, %arg1 : i32, i32
  }
  func.func @transform_3(%arg0: i32, %arg1: i32, %arg2: i32) -> (i32, i32) {
    %c0_i32 = arith.constant 0 : i32
    return %arg0, %arg1 : i32, i32
  }
  func.func @transform_4(%arg0: i32, %arg1: i32, %arg2: i32) -> (i32, i32, i32) {
    %c0_i32 = arith.constant 0 : i32
    return %arg2, %arg0, %arg1 : i32, i32, i32
  }
  func.func @transform_5(%arg0: i32, %arg1: i32, %arg2: i32) -> (i32, i32) {
    %c0_i32 = arith.constant 0 : i32
    return %arg0, %arg1 : i32, i32
  }
}

</mosaic_0001>

<llo_original>
// kernel: layer_forward_sequence.1
$region0: #{layer_forward_sequence.1}
  #allocation0 [shape = 'u32[]', space=smem, size = 0x4, offset = 0x4, fixed_abs, tag = 'smem constant byte address 0x4 - core index']
  #allocation1 [shape = 'u32[144,128]{1,0:T(1,128)}', space=vmem, size = 0x12000, scoped, tag = 'internal scratch']
  #allocation2 [shape = 'f32[16,128]{1,0:T(8,128)}', space=vmem, size = 0x2000, scoped, tag = 'scratch operand']
  %s0 = inlined_call_operand.vmem [shape: bf16[8,16,128], index: 0, kind: input, shape index: {}]
  %s1 = inlined_call_operand.vmem [shape: bf16[128,128], index: 1, kind: input, shape index: {}]
  %s2 = inlined_call_operand.vmem [shape: f32[1,128], index: 2, kind: input, shape index: {}]
  %s3 = inlined_call_operand.vmem [shape: f32[16,128], index: 3, kind: input, shape index: {}, may-alias: {3,5}]
  %s4 = inlined_call_operand.vmem [shape: bf16[8,16,128], index: 4, kind: output, shape index: {0}]
  %s5 = inlined_call_operand.vmem [shape: f32[16,128], index: 5, kind: output, shape index: {1}, may-alias: {3,5}]
  %6 = xla_tuple %s4, %s5
  %s7 = sld [smem:[#allocation0]]
  $region42: #{layer_forward_sequence.1} parent=0
    _
  %s9 = ssub.s32 1, %s7
  %s10 = scalar_select 0, %s9, %s7
  // Predicated region
  $region2: #{layer_forward_sequence.1} parent=0 // pred_check
    _
  $region3: #{layer_forward_sequence.1} parent=0 // pred_check_branch
    %12 = sbr.rel (0) target = $region5
  $region4: #{layer_forward_sequence.1} parent=0 // pred_region
    _
  $region5: #{layer_forward_sequence.1} parent=0 // pred_fallthru
    _
  // Predicated region
  $region6: #{layer_forward_sequence.1} parent=0 // pred_check
    _
  $region7: #{layer_forward_sequence.1} parent=0 // pred_check_branch
    %14 = sbr.rel (0) target = $region9
  $region8: #{layer_forward_sequence.1} parent=0 // pred_region
    _
  $region9: #{layer_forward_sequence.1} parent=0 // pred_fallthru
    _
  // Predicated region
  $region10: #{layer_forward_sequence.1} parent=0 // pred_check
    _
  $region11: #{layer_forward_sequence.1} parent=0 // pred_check_branch
    %16 = sbr.rel (0) target = $region13
  $region12: #{layer_forward_sequence.1} parent=0 // pred_region
    _
  $region13: #{layer_forward_sequence.1} parent=0 // pred_fallthru
    _
  // Predicated region
  $region14: #{layer_forward_sequence.1} parent=0 // pred_check
    _
  $region15: #{layer_forward_sequence.1} parent=0 // pred_check_branch
    %18 = sbr.rel (0) target = $region17
  $region16: #{layer_forward_sequence.1} parent=0 // pred_region
    _
  $region17: #{layer_forward_sequence.1} parent=0 // pred_fallthru
    _
  %p20 = scmp.eq.s32.totalorder 0, 0
  // Predicated region
  $region18: #{layer_forward_sequence.1} parent=0 // pred_check
    %p21 = pneg %p20
  $region19: #{layer_forward_sequence.1} parent=0 // pred_check_branch
    %23 = sbr.rel (%p21) target = $region21
  $region20: #{layer_forward_sequence.1} parent=0 // pred_region
    %v24 = vld [vmem:[%s3] sm:$0xff]
    %v25 = vld [vmem:[%s3 + $0x8] sm:$0xff]
    %26 = vst [vmem:[#allocation2] sm:$0xff] %v24
    %27 = vst [vmem:[#allocation2 + $0x8] sm:$0xff] %v25
  $region21: #{layer_forward_sequence.1} parent=0 // pred_fallthru
    _
  %v28 = vld [vmem:[%s0] sm:$0xf]
  %v29 = vld [vmem:[%s0 + $0x4] sm:$0xf]
  %v30 = vld [vmem:[%s0 + $0x8] sm:$0xf]
  %v31 = vld [vmem:[%s0 + $0xc] sm:$0xf]
  %v32 = vld [vmem:[%s0 + $0x10] sm:$0xf]
  %v33 = vld [vmem:[%s0 + $0x14] sm:$0xf]
  %v34 = vld [vmem:[%s0 + $0x18] sm:$0xf]
  %v35 = vld [vmem:[%s0 + $0x1c] sm:$0xf]
  %v36 = vld [vmem:[%s0 + $0x20] sm:$0xf]
  %v37 = vld [vmem:[%s0 + $0x24] sm:$0xf]
  %v38 = vld [vmem:[%s0 + $0x28] sm:$0xf]
  %v39 = vld [vmem:[%s0 + $0x2c] sm:$0xf]
  %v40 = vld [vmem:[%s0 + $0x30] sm:$0xf]
  %v41 = vld [vmem:[%s0 + $0x34] sm:$0xf]
  %v42 = vld [vmem:[%s0 + $0x38] sm:$0xf]
  %v43 = vld [vmem:[%s0 + $0x3c] sm:$0xf]
  %v44 = vld [vmem:[%s1] sm:$0xf]
  %v45 = vld [vmem:[%s1 + $0x4] sm:$0xf]
  %v46 = vld [vmem:[%s1 + $0x8] sm:$0xf]
  %v47 = vld [vmem:[%s1 + $0xc] sm:$0xf]
  %v48 = vld [vmem:[%s1 + $0x10] sm:$0xf]
  %v49 = vld [vmem:[%s1 + $0x14] sm:$0xf]
  %v50 = vld [vmem:[%s1 + $0x18] sm:$0xf]
  %v51 = vld [vmem:[%s1 + $0x1c] sm:$0xf]
  %v52 = vld [vmem:[%s1 + $0x20] sm:$0xf]
  %v53 = vld [vmem:[%s1 + $0x24] sm:$0xf]
  %v54 = vld [vmem:[%s1 + $0x28] sm:$0xf]
  %v55 = vld [vmem:[%s1 + $0x2c] sm:$0xf]
  %v56 = vld [vmem:[%s1 + $0x30] sm:$0xf]
  %v57 = vld [vmem:[%s1 + $0x34] sm:$0xf]
  %v58 = vld [vmem:[%s1 + $0x38] sm:$0xf]
  %v59 = vld [vmem:[%s1 + $0x3c] sm:$0xf]
  %v60 = vld [vmem:[%s2] sm:$0x1]
  %v62 = vlaneseq
  %v63 = vshrl.u32 %v62, 7
  %v64 = vsub.s32 0, %v63
  %v65 = vrot.slane %v60, %v64
  %v83 = vunpack.c.l.b16 %v28
  %v84 = vunpack.c.l.b16 %v29
  %v85 = vunpack.c.l.b16 %v30
  %v86 = vunpack.c.l.b16 %v31
  %v87 = vunpack.c.l.b16 %v32
  %v88 = vunpack.c.l.b16 %v33
  %v89 = vunpack.c.l.b16 %v34
  %v90 = vunpack.c.l.b16 %v35
  %v91 = vunpack.c.l.b16 %v36
  %v92 = vunpack.c.l.b16 %v37
  %v93 = vunpack.c.l.b16 %v38
  %v94 = vunpack.c.l.b16 %v39
  %v95 = vunpack.c.l.b16 %v40
  %v96 = vunpack.c.l.b16 %v41
  %v97 = vunpack.c.l.b16 %v42
  %v98 = vunpack.c.l.b16 %v43
  %v99 = vpack.c.b16 %v84, %v83
  %v100 = vpack.c.b16 %v86, %v85
  %v101 = vpack.c.b16 %v88, %v87
  %v102 = vpack.c.b16 %v90, %v89
  %v103 = vpack.c.b16 %v92, %v91
  %v104 = vpack.c.b16 %v94, %v93
  %v105 = vpack.c.b16 %v96, %v95
  %v106 = vpack.c.b16 %v98, %v97
  %v131 = vunpack.c.l.b16 %v44
  %v132 = vunpack.c.l.b16 %v45
  %v133 = vunpack.c.l.b16 %v46
  %v134 = vunpack.c.l.b16 %v47
  %v135 = vunpack.c.l.b16 %v48
  %v136 = vunpack.c.l.b16 %v49
  %v137 = vunpack.c.l.b16 %v50
  %v138 = vunpack.c.l.b16 %v51
  %v139 = vunpack.c.l.b16 %v52
  %v140 = vunpack.c.l.b16 %v53
  %v141 = vunpack.c.l.b16 %v54
  %v142 = vunpack.c.l.b16 %v55
  %v143 = vunpack.c.l.b16 %v56
  %v144 = vunpack.c.l.b16 %v57
  %v145 = vunpack.c.l.b16 %v58
  %v146 = vunpack.c.l.b16 %v59
  %v147 = vpack.c.b16 %v132, %v131
  %v148 = vpack.c.b16 %v134, %v133
  %v149 = vpack.c.b16 %v136, %v135
  %v150 = vpack.c.b16 %v138, %v137
  %v151 = vpack.c.b16 %v140, %v139
  %v152 = vpack.c.b16 %v142, %v141
  %v153 = vpack.c.b16 %v144, %v143
  %v154 = vpack.c.b16 %v146, %v145
  %163 = vmatprep.subr.bf16.mxu0 0
  %164 = vmatpush1.bf16.msra.mxu0 %v147
  %165 = vmatprep.subr.bf16.mxu0 0
  %166 = vmatpush1.bf16.msra.mxu0 %v148
  %167 = vmatprep.subr.bf16.mxu0 0
  %168 = vmatpush1.bf16.msra.mxu0 %v149
  %169 = vmatprep.subr.bf16.mxu0 0
  %170 = vmatpush1.bf16.msra.mxu0 %v150
  %171 = vmatprep.subr.bf16.mxu0 0
  %172 = vmatpush1.bf16.msra.mxu0 %v151
  %173 = vmatprep.subr.bf16.mxu0 0
  %174 = vmatpush1.bf16.msra.mxu0 %v152
  %175 = vmatprep.subr.bf16.mxu0 0
  %176 = vmatpush1.bf16.msra.mxu0 %v153
  %177 = vmatprep.subr.bf16.mxu0 0
  %178 = vmatpush1.bf16.msra.mxu0 %v154
  %179 = vmatprep.subr.bf16.mxu0 0
  %180 = vmatpush1.bf16.msra.mxu0 0
  %181 = vmatprep.subr.bf16.mxu0 0
  %182 = vmatpush1.bf16.msra.mxu0 0
  %183 = vmatprep.subr.bf16.mxu0 0
  %184 = vmatpush1.bf16.msra.mxu0 0
  %185 = vmatprep.subr.bf16.mxu0 0
  %186 = vmatpush1.bf16.msra.mxu0 0
  %187 = vmatprep.subr.bf16.mxu0 0
  %188 = vmatpush1.bf16.msra.mxu0 0
  %189 = vmatprep.subr.bf16.mxu0 0
  %190 = vmatpush1.bf16.msra.mxu0 0
  %191 = vmatprep.subr.bf16.mxu0 0
  %192 = vmatpush1.bf16.msra.mxu0 0
  %193 = vmatprep.subr.bf16.mxu0 0
  %194 = vmatpush1.bf16.msra.mxu0 0
  %195 = vmatprep.mubr.bf16.mxu0 0
  %196 = vmatmul.mubr.bf16.gmra.mrb[0].mxu0 %v99
  %v197 = vpop.f32.mrb[0].mxu0
  %v198 = vadd.f32 %v65, %v197
  %v199 = vpop.f32.mrb[0].mxu0
  %v200 = vpop.f32.mrb[0].mxu0
  %v201 = vadd.f32 %v65, %v200
  %v202 = vpop.f32.mrb[0].mxu0
  %203 = vmatprep.mubr.bf16.mxu0 0
  %204 = vmatmul.mubr.bf16.gmra.mrb[0].mxu0 %v100
  %v205 = vpop.f32.mrb[0].mxu0
  %v206 = vadd.f32 %v65, %v205
  %v207 = vpop.f32.mrb[0].mxu0
  %v208 = vpop.f32.mrb[0].mxu0
  %v209 = vadd.f32 %v65, %v208
  %v210 = vpop.f32.mrb[0].mxu0
  %211 = vmatprep.mubr.bf16.mxu0 0
  %212 = vmatmul.mubr.bf16.gmra.mrb[0].mxu0 %v101
  %v213 = vpop.f32.mrb[0].mxu0
  %v214 = vadd.f32 %v65, %v213
  %v215 = vpop.f32.mrb[0].mxu0
  %v216 = vpop.f32.mrb[0].mxu0
  %v217 = vadd.f32 %v65, %v216
  %v218 = vpop.f32.mrb[0].mxu0
  %219 = vmatprep.mubr.bf16.mxu0 0
  %220 = vmatmul.mubr.bf16.gmra.mrb[0].mxu0 %v102
  %v221 = vpop.f32.mrb[0].mxu0
  %v222 = vadd.f32 %v65, %v221
  %v223 = vpop.f32.mrb[0].mxu0
  %v224 = vpop.f32.mrb[0].mxu0
  %v225 = vadd.f32 %v65, %v224
  %v226 = vpop.f32.mrb[0].mxu0
  %227 = vmatprep.mubr.bf16.mxu0 0
  %228 = vmatmul.mubr.bf16.gmra.mrb[0].mxu0 %v103
  %v229 = vpop.f32.mrb[0].mxu0
  %v230 = vadd.f32 %v65, %v229
  %v231 = vpop.f32.mrb[0].mxu0
  %v232 = vpop.f32.mrb[0].mxu0
  %v233 = vadd.f32 %v65, %v232
  %v234 = vpop.f32.mrb[0].mxu0
  %235 = vmatprep.mubr.bf16.mxu0 0
  %236 = vmatmul.mubr.bf16.gmra.mrb[0].mxu0 %v104
  %v237 = vpop.f32.mrb[0].mxu0
  %v238 = vadd.f32 %v65, %v237
  %v239 = vpop.f32.mrb[0].mxu0
  %v240 = vpop.f32.mrb[0].mxu0
  %v241 = vadd.f32 %v65, %v240
  %v242 = vpop.f32.mrb[0].mxu0
  %243 = vmatprep.mubr.bf16.mxu0 0
  %244 = vmatmul.mubr.bf16.gmra.mrb[0].mxu0 %v105
  %v245 = vpop.f32.mrb[0].mxu0
  %v246 = vadd.f32 %v65, %v245
  %v247 = vpop.f32.mrb[0].mxu0
  %v248 = vpop.f32.mrb[0].mxu0
  %v249 = vadd.f32 %v65, %v248
  %v250 = vpop.f32.mrb[0].mxu0
  %251 = vmatprep.mubr.bf16.mxu0 0
  %252 = vmatmul.mubr.bf16.gmra.mrb[0].mxu0 %v106
  %v253 = vpop.f32.mrb[0].mxu0
  %v254 = vadd.f32 %v65, %v253
  %v255 = vpop.f32.mrb[0].mxu0
  %v256 = vpop.f32.mrb[0].mxu0
  %v257 = vadd.f32 %v65, %v256
  %v258 = vpop.f32.mrb[0].mxu0
  %259 = vdwg.mxu0
  %v260 = vld [vmem:[#allocation2] sm:$0xff]
  %v261 = vld [vmem:[#allocation2 + $0x8] sm:$0xff]
  %vm262 = vcmp.gt.f32.partialorder %v260, 1.0
  %vm263 = vcmp.gt.f32.partialorder %v261, 1.0
  %v264 = vsel %vm262, 1, 0
  %v265 = vsel %vm263, 1, 0
  %v266 = vcvt.s32.f32 %v264
  %v267 = vcvt.s32.f32 %v265
  %v268 = vmul.f32 %v260, 0.65
  %v269 = vmul.f32 %v261, 0.65
  %v270 = vadd.f32 %v268, %v198
  %v271 = vadd.f32 %v269, %v201
  %v272 = vsub.f32 %v270, %v266
  %v273 = vsub.f32 %v271, %v267
  %vm274 = vcmp.gt.f32.partialorder %v272, 1.0
  %vm275 = vcmp.gt.f32.partialorder %v273, 1.0
  %v276 = vsel %vm274, 1, 0
  %v277 = vsel %vm275, 1, 0
  %v278 = vcvt.s32.f32 %v276
  %v279 = vcvt.s32.f32 %v277
  %v280 = vpack.c.bf16 %v279, %v278
  %v282 = vunpack.c.l.b16 %v280
  %v283 = vunpack.c.h.b16 %v280
  %v284 = vpack.c.b16 %v282, %v282
  %v285 = vpack.c.b16 %v283, %v283
  %288 = vst [vmem:[%s4] sm:$0xf] %v284
  %289 = vst [vmem:[%s4 + $0x4] sm:$0xf] %v285
  %v290 = vmul.f32 %v272, 0.65
  %v291 = vmul.f32 %v273, 0.65
  %v292 = vadd.f32 %v290, %v206
  %v293 = vadd.f32 %v291, %v209
  %v294 = vsub.f32 %v292, %v278
  %v295 = vsub.f32 %v293, %v279
  %vm296 = vcmp.gt.f32.partialorder %v294, 1.0
  %vm297 = vcmp.gt.f32.partialorder %v295, 1.0
  %v298 = vsel %vm296, 1, 0
  %v299 = vsel %vm297, 1, 0
  %v300 = vcvt.s32.f32 %v298
  %v301 = vcvt.s32.f32 %v299
  %v302 = vpack.c.bf16 %v301, %v300
  %v304 = vunpack.c.l.b16 %v302
  %v305 = vunpack.c.h.b16 %v302
  %v306 = vpack.c.b16 %v304, %v304
  %v307 = vpack.c.b16 %v305, %v305
  %s310 = scalar_lea.vmem %s4, 8
  %311 = vst [vmem:[%s310] sm:$0xf] %v306
  %312 = vst [vmem:[%s310 + $0x4] sm:$0xf] %v307
  %v313 = vmul.f32 %v294, 0.65
  %v314 = vmul.f32 %v295, 0.65
  %v315 = vadd.f32 %v313, %v214
  %v316 = vadd.f32 %v314, %v217
  %v317 = vsub.f32 %v315, %v300
  %v318 = vsub.f32 %v316, %v301
  %vm319 = vcmp.gt.f32.partialorder %v317, 1.0
  %vm320 = vcmp.gt.f32.partialorder %v318, 1.0
  %v321 = vsel %vm319, 1, 0
  %v322 = vsel %vm320, 1, 0
  %v323 = vcvt.s32.f32 %v321
  %v324 = vcvt.s32.f32 %v322
  %v325 = vpack.c.bf16 %v324, %v323
  %v327 = vunpack.c.l.b16 %v325
  %v328 = vunpack.c.h.b16 %v325
  %v329 = vpack.c.b16 %v327, %v327
  %v330 = vpack.c.b16 %v328, %v328
  %s333 = scalar_lea.vmem %s4, 16
  %334 = vst [vmem:[%s333] sm:$0xf] %v329
  %335 = vst [vmem:[%s333 + $0x4] sm:$0xf] %v330
  %v336 = vmul.f32 %v317, 0.65
  %v337 = vmul.f32 %v318, 0.65
  %v338 = vadd.f32 %v336, %v222
  %v339 = vadd.f32 %v337, %v225
  %v340 = vsub.f32 %v338, %v323
  %v341 = vsub.f32 %v339, %v324
  %vm342 = vcmp.gt.f32.partialorder %v340, 1.0
  %vm343 = vcmp.gt.f32.partialorder %v341, 1.0
  %v344 = vsel %vm342, 1, 0
  %v345 = vsel %vm343, 1, 0
  %v346 = vcvt.s32.f32 %v344
  %v347 = vcvt.s32.f32 %v345
  %v348 = vpack.c.bf16 %v347, %v346
  %v350 = vunpack.c.l.b16 %v348
  %v351 = vunpack.c.h.b16 %v348
  %v352 = vpack.c.b16 %v350, %v350
  %v353 = vpack.c.b16 %v351, %v351
  %s356 = scalar_lea.vmem %s4, 24
  %357 = vst [vmem:[%s356] sm:$0xf] %v352
  %358 = vst [vmem:[%s356 + $0x4] sm:$0xf] %v353
  %v359 = vmul.f32 %v340, 0.65
  %v360 = vmul.f32 %v341, 0.65
  %v361 = vadd.f32 %v359, %v230
  %v362 = vadd.f32 %v360, %v233
  %v363 = vsub.f32 %v361, %v346
  %v364 = vsub.f32 %v362, %v347
  %vm365 = vcmp.gt.f32.partialorder %v363, 1.0
  %vm366 = vcmp.gt.f32.partialorder %v364, 1.0
  %v367 = vsel %vm365, 1, 0
  %v368 = vsel %vm366, 1, 0
  %v369 = vcvt.s32.f32 %v367
  %v370 = vcvt.s32.f32 %v368
  %v371 = vpack.c.bf16 %v370, %v369
  %v373 = vunpack.c.l.b16 %v371
  %v374 = vunpack.c.h.b16 %v371
  %v375 = vpack.c.b16 %v373, %v373
  %v376 = vpack.c.b16 %v374, %v374
  %s379 = scalar_lea.vmem %s4, 32
  %380 = vst [vmem:[%s379] sm:$0xf] %v375
  %381 = vst [vmem:[%s379 + $0x4] sm:$0xf] %v376
  %v382 = vmul.f32 %v363, 0.65
  %v383 = vmul.f32 %v364, 0.65
  %v384 = vadd.f32 %v382, %v238
  %v385 = vadd.f32 %v383, %v241
  %v386 = vsub.f32 %v384, %v369
  %v387 = vsub.f32 %v385, %v370
  %vm388 = vcmp.gt.f32.partialorder %v386, 1.0
  %vm389 = vcmp.gt.f32.partialorder %v387, 1.0
  %v390 = vsel %vm388, 1, 0
  %v391 = vsel %vm389, 1, 0
  %v392 = vcvt.s32.f32 %v390
  %v393 = vcvt.s32.f32 %v391
  %v394 = vpack.c.bf16 %v393, %v392
  %v396 = vunpack.c.l.b16 %v394
  %v397 = vunpack.c.h.b16 %v394
  %v398 = vpack.c.b16 %v396, %v396
  %v399 = vpack.c.b16 %v397, %v397
  %s402 = scalar_lea.vmem %s4, 40
  %403 = vst [vmem:[%s402] sm:$0xf] %v398
  %404 = vst [vmem:[%s402 + $0x4] sm:$0xf] %v399
  %v405 = vmul.f32 %v386, 0.65
  %v406 = vmul.f32 %v387, 0.65
  %v407 = vadd.f32 %v405, %v246
  %v408 = vadd.f32 %v406, %v249
  %v409 = vsub.f32 %v407, %v392
  %v410 = vsub.f32 %v408, %v393
  %vm411 = vcmp.gt.f32.partialorder %v409, 1.0
  %vm412 = vcmp.gt.f32.partialorder %v410, 1.0
  %v413 = vsel %vm411, 1, 0
  %v414 = vsel %vm412, 1, 0
  %v415 = vcvt.s32.f32 %v413
  %v416 = vcvt.s32.f32 %v414
  %v417 = vpack.c.bf16 %v416, %v415
  %v419 = vunpack.c.l.b16 %v417
  %v420 = vunpack.c.h.b16 %v417
  %v421 = vpack.c.b16 %v419, %v419
  %v422 = vpack.c.b16 %v420, %v420
  %s425 = scalar_lea.vmem %s4, 48
  %426 = vst [vmem:[%s425] sm:$0xf] %v421
  %427 = vst [vmem:[%s425 + $0x4] sm:$0xf] %v422
  %v428 = vmul.f32 %v409, 0.65
  %v429 = vmul.f32 %v410, 0.65
  %v430 = vadd.f32 %v428, %v254
  %v431 = vadd.f32 %v429, %v257
  %v432 = vsub.f32 %v430, %v415
  %v433 = vsub.f32 %v431, %v416
  %vm434 = vcmp.gt.f32.partialorder %v432, 1.0
  %vm435 = vcmp.gt.f32.partialorder %v433, 1.0
  %v436 = vsel %vm434, 1, 0
  %v437 = vsel %vm435, 1, 0
  %v438 = vcvt.s32.f32 %v436
  %v439 = vcvt.s32.f32 %v437
  %v440 = vpack.c.bf16 %v439, %v438
  %v442 = vunpack.c.l.b16 %v440
  %v443 = vunpack.c.h.b16 %v440
  %v444 = vpack.c.b16 %v442, %v442
  %v445 = vpack.c.b16 %v443, %v443
  %s448 = scalar_lea.vmem %s4, 56
  %449 = vst [vmem:[%s448] sm:$0xf] %v444
  %450 = vst [vmem:[%s448 + $0x4] sm:$0xf] %v445
  %451 = vst [vmem:[#allocation2] sm:$0xff] %v432
  %452 = vst [vmem:[#allocation2 + $0x8] sm:$0xff] %v433
  // Predicated region
  $region22: #{layer_forward_sequence.1} parent=0 // pred_check
    %p453 = pneg %p20
  $region23: #{layer_forward_sequence.1} parent=0 // pred_check_branch
    %455 = sbr.rel (%p453) target = $region25
  $region24: #{layer_forward_sequence.1} parent=0 // pred_region
    %456 = vst [vmem:[%s5] sm:$0xff] %v432
    %457 = vst [vmem:[%s5 + $0x8] sm:$0xff] %v433
  $region25: #{layer_forward_sequence.1} parent=0 // pred_fallthru
    _
  // Predicated region
  $region26: #{layer_forward_sequence.1} parent=0 // pred_check
    _
  $region27: #{layer_forward_sequence.1} parent=0 // pred_check_branch
    %459 = sbr.rel (0) target = $region29
  $region28: #{layer_forward_sequence.1} parent=0 // pred_region
    _
  $region29: #{layer_forward_sequence.1} parent=0 // pred_fallthru
    _
  // Predicated region
  $region30: #{layer_forward_sequence.1} parent=0 // pred_check
    _
  $region31: #{layer_forward_sequence.1} parent=0 // pred_check_branch
    %461 = sbr.rel (0) target = $region33
  $region32: #{layer_forward_sequence.1} parent=0 // pred_region
    _
  $region33: #{layer_forward_sequence.1} parent=0 // pred_fallthru
    _
  // Predicated region
  $region34: #{layer_forward_sequence.1} parent=0 // pred_check
    _
  $region35: #{layer_forward_sequence.1} parent=0 // pred_check_branch
    %463 = sbr.rel (0) target = $region37
  $region36: #{layer_forward_sequence.1} parent=0 // pred_region
    _
  $region37: #{layer_forward_sequence.1} parent=0 // pred_fallthru
    _
  // Predicated region
  $region38: #{layer_forward_sequence.1} parent=0 // pred_check
    _
  $region39: #{layer_forward_sequence.1} parent=0 // pred_check_branch
    %465 = sbr.rel (0) target = $region41
  $region40: #{layer_forward_sequence.1} parent=0 // pred_region
    _
  $region41: #{layer_forward_sequence.1} parent=0 // pred_fallthru
    _

</llo_original>
